<compile_context>
chip_gen: v5e
topology: v5e:2x2
jax: 0.10.0
libtpu: 0.0.40
codegen_flags: <defaults>
</compile_context>

<pallas_src>
import math

import jax
import jax.numpy as jnp
from jax import lax
from jax.experimental import pallas as pl
from jax.experimental.pallas import tpu as pltpu

LOG_2PI = float(math.log(2.0 * math.pi))


def _round_up(x, m):
    return ((x + m - 1) // m) * m


def _pick_tile_v(V, E, itemsize=4, block_budget_bytes=2 << 20):
    """Largest row-tile that divides V while keeping one (tile_v, E) block
    under ~2 MiB, so 3 inputs + 1 output, double-buffered, stay well inside
    the default scoped-VMEM limit on v5e/v6e *and* v7x's smaller 64 MiB VMEM."""
    max_rows = max(8, block_budget_bytes // (E * itemsize))
    for cand in (4096, 2048, 1024, 512, 256, 128, 64, 32, 16, 8):
        if cand <= max_rows and V % cand == 0:
            return cand
    # TODO(synk): vocab sizes with no aligned divisor fall back to one
    # full-array block; pad+mask would be needed to tile those.
    return V


# ---------------------------------------------------------------------------
# Kernel 1: reparameterization + KL log-density reductions (training path of
# VariationalEmbeddings.reparameterize).
#   embeddings = mean + softplus(rho) * eps
#   log_p_w    = sum log N(embeddings; 0, sigma_prior)
#   log_q_w    = sum log N(embeddings; mean, std)
# Memory-bound elementwise pass tiled over the vocab axis with large tiles.
# Each grid step emits a lane-shaped (1, E) partial sum (pure VPU sublane
# reduce in-kernel); the single cross-lane reduce to a scalar happens once,
# outside the kernel.  All output blocks are independent per grid step, so the
# vocab axis is marked "parallel" (megacore sharding on v7x).
# Math simplifications: log q uses (emb - mean) = std*eps  =>  -eps^2/2,
# log p uses precomputed constants; softplus is the numerically stable form.
# ---------------------------------------------------------------------------
def reparameterize_pallas(mean, rho, eps, sigma_prior=1.0, tile_v=None):
    V, E = mean.shape
    if tile_v is None:
        tile_v = _pick_tile_v(V, E, jnp.dtype(mean.dtype).itemsize)
    assert V % tile_v == 0, "tile_v must divide the vocab size"
    num_tiles = V // tile_v

    c_p = float(-0.5 * LOG_2PI - math.log(sigma_prior))
    inv_2var = float(0.5 / (sigma_prior ** 2))
    c_q = float(-0.5 * LOG_2PI)

    def kernel(mean_ref, rho_ref, eps_ref, emb_ref, lp_ref, lq_ref):
        mean_b = mean_ref[...].astype(jnp.float32)
        rho_b = rho_ref[...].astype(jnp.float32)
        eps_b = eps_ref[...].astype(jnp.float32)

        # numerically stable softplus: log(1 + exp(rho)) without overflow
        std = jnp.maximum(rho_b, 0.0) + jnp.log(1.0 + jnp.exp(-jnp.abs(rho_b)))
        emb = mean_b + std * eps_b
        emb_ref[...] = emb.astype(emb_ref.dtype)

        # log N(emb; 0, sigma_prior) = c_p - emb^2 * (1 / (2 sigma^2))
        # log N(emb; mean, std)      = c_q - log(std) - eps^2 / 2
        logp = c_p - (emb * emb) * inv_2var
        logq = c_q - jnp.log(std) - 0.5 * (eps_b * eps_b)

        lp_ref[...] = jnp.sum(logp, axis=0, keepdims=True).reshape(1, 1, E)
        lq_ref[...] = jnp.sum(logq, axis=0, keepdims=True).reshape(1, 1, E)

    emb, lp_parts, lq_parts = pl.pallas_call(
        kernel,
        out_shape=(jax.ShapeDtypeStruct((V, E), mean.dtype),
                   jax.ShapeDtypeStruct((num_tiles, 1, E), jnp.float32),
                   jax.ShapeDtypeStruct((num_tiles, 1, E), jnp.float32)),
        grid_spec=pltpu.PrefetchScalarGridSpec(
            num_scalar_prefetch=0,
            grid=(num_tiles,),
            in_specs=[pl.BlockSpec((tile_v, E), lambda i: (i, 0)),
                      pl.BlockSpec((tile_v, E), lambda i: (i, 0)),
                      pl.BlockSpec((tile_v, E), lambda i: (i, 0))],
            out_specs=(pl.BlockSpec((tile_v, E), lambda i: (i, 0)),
                       pl.BlockSpec((1, 1, E), lambda i: (i, 0, 0)),
                       pl.BlockSpec((1, 1, E), lambda i: (i, 0, 0))),
        ),
        compiler_params=pltpu.CompilerParams(
            dimension_semantics=("parallel",)),
    )(mean, rho, eps)

    # final (tiny) cross-lane / cross-tile reduce in plain JAX
    return emb, jnp.sum(lp_parts), jnp.sum(lq_parts)


# ---------------------------------------------------------------------------
# Kernel 2a: small-table lookup via one-hot matmul on the MXU.  The whole
# (V, E) table is resident in VMEM; tokens are processed in large lane/sublane
# aligned tiles (up to 256 rows) so the systolic array is well filled and the
# grid has few steps.  Token axis is "parallel" (megacore on v7x).
# ---------------------------------------------------------------------------
def _lookup_onehot(embeddings, idx, max_tile_t=256):
    V, E = embeddings.shape
    T = idx.shape[0]
    tile_t = min(max_tile_t, _round_up(T, 8))
    T_pad = _round_up(T, tile_t)
    idx2 = jnp.pad(idx, (0, T_pad - T)).reshape(T_pad, 1)

    def kernel(idx_ref, emb_ref, out_ref):
        ids = idx_ref[...]                                        # (tile_t, 1)
        iota = lax.broadcasted_iota(jnp.int32, (tile_t, V), 1)
        onehot = (iota == ids).astype(emb_ref.dtype)              # (tile_t, V)
        out_ref[...] = jnp.dot(onehot, emb_ref[...],
                               preferred_element_type=jnp.float32
                               ).astype(out_ref.dtype)

    out = pl.pallas_call(
        kernel,
        out_shape=jax.ShapeDtypeStruct((T_pad, E), embeddings.dtype),
        grid_spec=pltpu.PrefetchScalarGridSpec(
            num_scalar_prefetch=0,
            grid=(T_pad // tile_t,),
            in_specs=[pl.BlockSpec((tile_t, 1), lambda i: (i, 0)),
                      pl.BlockSpec((V, E), lambda i: (0, 0))],
            out_specs=pl.BlockSpec((tile_t, E), lambda i: (i, 0)),
        ),
        compiler_params=pltpu.CompilerParams(
            dimension_semantics=("parallel",)),
    )(idx2, embeddings)
    return out[:T]


# ---------------------------------------------------------------------------
# Kernel 2b: large-table lookup via scalar-prefetched manual-DMA row gather.
# The table stays in HBM (memory_space=pl.ANY); indices live in SMEM (scalar
# prefetch); each grid step issues tile_t row DMAs into a VMEM staging buffer
# and writes one lane-dense (tile_t, E) output block.  O(E) bytes per token,
# no VMEM residency requirement (works for tables > v7x's 64 MiB VMEM).
# ---------------------------------------------------------------------------
def _lookup_dma_gather(embeddings, idx, tile_t=32):
    V, E = embeddings.shape
    T = idx.shape[0]
    tile_t = min(tile_t, _round_up(T, 8))
    T_pad = _round_up(T, tile_t)
    idx_pad = jnp.pad(idx, (0, T_pad - T))

    def kernel(idx_ref, emb_hbm, out_ref, buf, sems):
        t0 = pl.program_id(0) * tile_t
        copies = []
        for j in range(tile_t):                       # static unroll
            row = idx_ref[t0 + j]
            cp = pltpu.make_async_copy(emb_hbm.at[pl.ds(row, 1), :],
                                       buf.at[pl.ds(j, 1), :],
                                       sems.at[j])
            cp.start()
            copies.append(cp)
        for cp in copies:
            cp.wait()
        out_ref[...] = buf[...]

    out = pl.pallas_call(
        kernel,
        out_shape=jax.ShapeDtypeStruct((T_pad, E), embeddings.dtype),
        grid_spec=pltpu.PrefetchScalarGridSpec(
            num_scalar_prefetch=1,
            grid=(T_pad // tile_t,),
            in_specs=[pl.BlockSpec(memory_space=pl.ANY)],
            out_specs=pl.BlockSpec((tile_t, E), lambda i, idx_ref: (i, 0)),
            scratch_shapes=[pltpu.VMEM((tile_t, E), embeddings.dtype),
                            pltpu.SemaphoreType.DMA((tile_t,))],
        ),
        compiler_params=pltpu.CompilerParams(
            dimension_semantics=("arbitrary",)),
    )(idx_pad, embeddings)
    return out[:T]


_ONEHOT_TABLE_BYTES = 4 * 1024 * 1024   # keep one-hot path only for small tables


def embedding_lookup_pallas(embeddings, data, path=None):
    """embeddings[data] (VariationalEmbeddings.lookup)."""
    V, E = embeddings.shape
    orig_shape = data.shape
    idx = data.reshape(-1).astype(jnp.int32)
    if path is None:
        table_bytes = V * E * jnp.dtype(embeddings.dtype).itemsize
        path = "onehot" if table_bytes <= _ONEHOT_TABLE_BYTES else "gather"
    if path == "onehot":
        flat = _lookup_onehot(embeddings, idx)
    elif path == "gather":
        flat = _lookup_dma_gather(embeddings, idx)
    else:
        raise ValueError(f"unknown lookup path: {path}")
    return flat.reshape(*orig_shape, E)


def variational_embeddings_forward(mean, rho, eps, data, sigma_prior=1.0,
                                    training=True, lookup_path=None):
    """Forward pass of VariationalEmbeddings.

    Returns (var_data, log_p_w, log_q_w); the two scalars correspond to the
    self.log_p_w / self.log_q_w side effects of the PyTorch module.
    """
    if training:
        embeddings, log_p_w, log_q_w = reparameterize_pallas(
            mean, rho, eps, sigma_prior=sigma_prior)
    else:
        embeddings = mean
        log_p_w = jnp.float32(0.0)
        log_q_w = jnp.float32(0.0)
    var_data = embedding_lookup_pallas(embeddings, data, path=lookup_path)
    return var_data, log_p_w, log_q_w


if __name__ == "__main__":
    V, E = 64, 128        # vocab size, embedding size
    B, S = 2, 8           # batch, sequence length
    sigma_prior = 1.0

    key = jax.random.PRNGKey(0)
    k_mean, k_rho, k_eps, k_data = jax.random.split(key, 4)
    mean = (0.1 * jax.random.normal(k_mean, (V, E))).astype(jnp.float32)
    rho = (jax.random.normal(k_rho, (V, E)) - 3.0).astype(jnp.float32)
    # eps ~ N(0, 1): torch.randn_like equivalent, generated host-side so the
    # kernel stays deterministic / checkable.
    eps = jax.random.normal(k_eps, (V, E)).astype(jnp.float32)
    data = jax.random.randint(k_data, (B, S), 0, V, dtype=jnp.int32)

    # default path (auto-selects the one-hot MXU gather for this tiny table)
    var_data, log_p_w, log_q_w = variational_embeddings_forward(
        mean, rho, eps, data, sigma_prior=sigma_prior)
    jax.block_until_ready((var_data, log_p_w, log_q_w))

    # also exercise the HBM DMA-gather path used for large vocabularies
    emb_k, _, _ = reparameterize_pallas(mean, rho, eps, sigma_prior=sigma_prior)
    var_data_gather = embedding_lookup_pallas(emb_k, data, path="gather")
    jax.block_until_ready(var_data_gather)

    # Pure-JAX reference (same math as the PyTorch module in training mode).
    std_ref = jnp.log(1.0 + jnp.exp(rho))
    emb_ref = mean + std_ref * eps
    out_ref = emb_ref[data]
    logp_ref = jnp.sum(-0.5 * LOG_2PI - math.log(sigma_prior)
                       - emb_ref ** 2 / (2.0 * sigma_prior ** 2))
    logq_ref = jnp.sum(-0.5 * LOG_2PI - jnp.log(std_ref)
                       - (emb_ref - mean) ** 2 / (2.0 * std_ref ** 2))

    assert var_data.shape == (B, S, E)
    assert jnp.allclose(var_data, out_ref, rtol=1e-5, atol=1e-5)
    assert jnp.allclose(var_data_gather, out_ref, rtol=1e-5, atol=1e-5)
    assert jnp.allclose(log_p_w, logp_ref, rtol=1e-4, atol=1e-3)
    assert jnp.allclose(log_q_w, logq_ref, rtol=1e-4, atol=1e-3)

    print("KERNEL_OK")
</pallas_src>

<mosaic_0001>
module attributes {stable_mosaic.version = 11 : i64} {
  func.func @kernel(%arg0: i32, %arg1: memref<64x128xf32, #tpu.memory_space<vmem>>, %arg2: memref<64x128xf32, #tpu.memory_space<vmem>>, %arg3: memref<64x128xf32, #tpu.memory_space<vmem>>, %arg4: memref<64x128xf32, #tpu.memory_space<vmem>>, %arg5: memref<1x1x128xf32, #tpu.memory_space<vmem>>, %arg6: memref<1x1x128xf32, #tpu.memory_space<vmem>>) attributes {dimension_semantics = [#tpu.dimension_semantics<parallel>], iteration_bounds = array<i64: 1>, scalar_prefetch = 0 : i64, scratch_operands = 0 : i64, tpu.core_type = #tpu.core_type<tc>, window_params = [{transform_indices = @transform_0, window_bounds = array<i64: 64, 128>}, {transform_indices = @transform_1, window_bounds = array<i64: 64, 128>}, {transform_indices = @transform_2, window_bounds = array<i64: 64, 128>}, {transform_indices = @transform_3, window_bounds = array<i64: 64, 128>}, {transform_indices = @transform_4, window_bounds = array<i64: 1, 1, 128>}, {transform_indices = @transform_5, window_bounds = array<i64: 1, 1, 128>}]} {
    %c0 = arith.constant 0 : index
    %c0_0 = arith.constant 0 : index
    %0 = vector.load %arg1[%c0, %c0_0] : memref<64x128xf32, #tpu.memory_space<vmem>>, vector<64x128xf32>
    %c0_1 = arith.constant 0 : index
    %c0_2 = arith.constant 0 : index
    %1 = vector.load %arg2[%c0_1, %c0_2] : memref<64x128xf32, #tpu.memory_space<vmem>>, vector<64x128xf32>
    %c0_3 = arith.constant 0 : index
    %c0_4 = arith.constant 0 : index
    %2 = vector.load %arg3[%c0_3, %c0_4] : memref<64x128xf32, #tpu.memory_space<vmem>>, vector<64x128xf32>
    %cst = arith.constant 0.000000e+00 : f32
    %3 = vector.broadcast %cst : f32 to vector<64x128xf32>
    %4 = arith.maximumf %1, %3 : vector<64x128xf32>
    %5 = math.absf %1 : vector<64x128xf32>
    %cst_5 = arith.constant 0.000000e+00 : f32
    %6 = vector.broadcast %cst_5 : f32 to vector<64x128xf32>
    %7 = arith.subf %6, %5 : vector<64x128xf32>
    %8 = math.exp %7 : vector<64x128xf32>
    %cst_6 = arith.constant 1.000000e+00 : f32
    %9 = vector.broadcast %cst_6 : f32 to vector<64x128xf32>
    %10 = arith.addf %9, %8 : vector<64x128xf32>
    %11 = math.log %10 : vector<64x128xf32>
    %12 = arith.addf %4, %11 : vector<64x128xf32>
    %13 = arith.mulf %12, %2 : vector<64x128xf32>
    %14 = arith.addf %0, %13 : vector<64x128xf32>
    %c0_7 = arith.constant 0 : index
    %c0_8 = arith.constant 0 : index
    %15 = vector.load %arg4[%c0_7, %c0_8] : memref<64x128xf32, #tpu.memory_space<vmem>>, vector<64x128xf32>
    tpu.vector_store %arg4[%c0_7, %c0_8], %14 {strides = array<i32>} : memref<64x128xf32, #tpu.memory_space<vmem>>, vector<64x128xf32>,
    %16 = arith.mulf %14, %14 : vector<64x128xf32>
    %cst_9 = arith.constant 5.000000e-01 : f32
    %17 = vector.broadcast %cst_9 : f32 to vector<64x128xf32>
    %18 = arith.mulf %16, %17 : vector<64x128xf32>
    %cst_10 = arith.constant -0.918938517 : f32
    %19 = vector.broadcast %cst_10 : f32 to vector<64x128xf32>
    %20 = arith.subf %19, %18 : vector<64x128xf32>
    %21 = math.log %12 : vector<64x128xf32>
    %cst_11 = arith.constant -0.918938517 : f32
    %22 = vector.broadcast %cst_11 : f32 to vector<64x128xf32>
    %23 = arith.subf %22, %21 : vector<64x128xf32>
    %24 = arith.mulf %2, %2 : vector<64x128xf32>
    %cst_12 = arith.constant 5.000000e-01 : f32
    %25 = vector.broadcast %cst_12 : f32 to vector<64x128xf32>
    %26 = arith.mulf %25, %24 : vector<64x128xf32>
    %27 = arith.subf %23, %26 : vector<64x128xf32>
    %cst_13 = arith.constant dense<0.000000e+00> : vector<128xf32>
    %28 = vector.multi_reduction <add>, %20, %cst_13 [0] : vector<64x128xf32> to vector<128xf32>
    %29 = vector.shape_cast %28 : vector<128xf32> to vector<1x128xf32>
    %30 = vector.shape_cast %29 : vector<1x128xf32> to vector<1x1x128xf32>
    %c0_14 = arith.constant 0 : index
    %c0_15 = arith.constant 0 : index
    %c0_16 = arith.constant 0 : index
    %31 = vector.load %arg5[%c0_14, %c0_15, %c0_16] : memref<1x1x128xf32, #tpu.memory_space<vmem>>, vector<1x1x128xf32>
    tpu.vector_store %arg5[%c0_14, %c0_15, %c0_16], %30 {strides = array<i32>} : memref<1x1x128xf32, #tpu.memory_space<vmem>>, vector<1x1x128xf32>,
    %cst_17 = arith.constant dense<0.000000e+00> : vector<128xf32>
    %32 = vector.multi_reduction <add>, %27, %cst_17 [0] : vector<64x128xf32> to vector<128xf32>
    %33 = vector.shape_cast %32 : vector<128xf32> to vector<1x128xf32>
    %34 = vector.shape_cast %33 : vector<1x128xf32> to vector<1x1x128xf32>
    %c0_18 = arith.constant 0 : index
    %c0_19 = arith.constant 0 : index
    %c0_20 = arith.constant 0 : index
    %35 = vector.load %arg6[%c0_18, %c0_19, %c0_20] : memref<1x1x128xf32, #tpu.memory_space<vmem>>, vector<1x1x128xf32>
    tpu.vector_store %arg6[%c0_18, %c0_19, %c0_20], %34 {strides = array<i32>} : memref<1x1x128xf32, #tpu.memory_space<vmem>>, vector<1x1x128xf32>,
    return
  }
  func.func @transform_0(%arg0: i32) -> (i32, i32) {
    %c0_i32 = arith.constant 0 : i32
    %c0_i32_0 = arith.constant 0 : i32
    return %arg0, %c0_i32 : i32, i32
  }
  func.func @transform_1(%arg0: i32) -> (i32, i32) {
    %c0_i32 = arith.constant 0 : i32
    %c0_i32_0 = arith.constant 0 : i32
    return %arg0, %c0_i32 : i32, i32
  }
  func.func @transform_2(%arg0: i32) -> (i32, i32) {
    %c0_i32 = arith.constant 0 : i32
    %c0_i32_0 = arith.constant 0 : i32
    return %arg0, %c0_i32 : i32, i32
  }
  func.func @transform_3(%arg0: i32) -> (i32, i32) {
    %c0_i32 = arith.constant 0 : i32
    %c0_i32_0 = arith.constant 0 : i32
    return %arg0, %c0_i32 : i32, i32
  }
  func.func @transform_4(%arg0: i32) -> (i32, i32, i32) {
    %c0_i32 = arith.constant 0 : i32
    %c0_i32_0 = arith.constant 0 : i32
    %c0_i32_1 = arith.constant 0 : i32
    return %arg0, %c0_i32, %c0_i32_0 : i32, i32, i32
  }
  func.func @transform_5(%arg0: i32) -> (i32, i32, i32) {
    %c0_i32 = arith.constant 0 : i32
    %c0_i32_0 = arith.constant 0 : i32
    %c0_i32_1 = arith.constant 0 : i32
    return %arg0, %c0_i32, %c0_i32_0 : i32, i32, i32
  }
}

</mosaic_0001>

<llo_original>
// kernel: tpu_custom_call.1
$region0: #{tpu_custom_call.1}
  #allocation0 [shape = 'u32[]', space=smem, size = 0x4, offset = 0x4, fixed_abs, tag = 'smem constant byte address 0x4 - core index']
  #allocation1 [shape = 'u32[72,128]{1,0:T(1,128)}', space=vmem, size = 0x9000, scoped, tag = 'internal scratch']
  %s0 = inlined_call_operand.hbm [shape: f32[64,128], index: 0, kind: input, shape index: {}]
  %s1 = inlined_call_operand.hbm [shape: f32[64,128], index: 1, kind: input, shape index: {}]
  %s2 = inlined_call_operand.hbm [shape: f32[64,128], index: 2, kind: input, shape index: {}]
  %s3 = inlined_call_operand.hbm [shape: f32[64,128], index: 3, kind: output, shape index: {0}]
  %s4 = inlined_call_operand.hbm [shape: f32[1,1,128], index: 4, kind: output, shape index: {1}]
  %s5 = inlined_call_operand.hbm [shape: f32[1,1,128], index: 5, kind: output, shape index: {2}]
  %6 = xla_tuple %s3, %s4, %s5
  %s7 = sld [smem:[#allocation0]]
  $region50: #{tpu_custom_call.1} parent=0
    _
  %s9 = ssub.s32 1, %s7
  %s10 = scalar_select 0, %s9, %s7
  $region1: #{tpu_custom_call.1} parent=0
    #allocation2 [shape = 'u8[32768]{0}', space=vmem, size = 0x8000, scoped, tag = 'input window, operand 0, single buffered']
    #allocation3 [shape = 's32[1]{0}', space=sflag, size = 0x4, scoped, tag = 'scoped memory for tpu_custom_call.1']
    #allocation4 [shape = 's32[1]{0}', space=sflag, size = 0x4, scoped, tag = 'scoped memory for tpu_custom_call.1']
    #allocation5 [shape = 'u8[32768]{0}', space=vmem, size = 0x8000, scoped, tag = 'input window, operand 1, single buffered']
    #allocation6 [shape = 's32[1]{0}', space=sflag, size = 0x4, scoped, tag = 'scoped memory for tpu_custom_call.1']
    #allocation7 [shape = 'u8[32768]{0}', space=vmem, size = 0x8000, scoped, tag = 'input window, operand 2, single buffered']
    #allocation8 [shape = 'u8[32768]{0}', space=vmem, size = 0x8000, scoped, tag = 'output window, operand 0, single buffered']
    #allocation9 [shape = 'u8[512]{0}', space=vmem, size = 0x400, scoped, tag = 'output window, operand 1, single buffered']
    #allocation10 [shape = 's32[1]{0}', space=sflag, size = 0x4, scoped, tag = 'scoped memory for tpu_custom_call.1']
    #allocation11 [shape = 'u8[512]{0}', space=vmem, size = 0x400, scoped, tag = 'output window, operand 2, single buffered']
    %11 = vsyncpa [#allocation3], 0
    %12 = vsyncpa [#allocation6], 0
    %13 = vsyncpa [#allocation4], 0
    %14 = vsyncpa [#allocation10], 0
    // Predicated region
    $region2: #{tpu_custom_call.1} parent=1 // pred_check
      _
    $region3: #{tpu_custom_call.1} parent=1 // pred_check_branch
      %16 = sbr.rel (0) target = $region5
    $region4: #{tpu_custom_call.1} parent=1 // pred_region
      %18 = vsyncadd [#allocation3], 0
      %s19 = sshll.u32 %s0, 4
      %s20 = int_to_ptr.hbm [resolvable:$true] %s19
      %s21 = sshll.u32 [#allocation2], 4
      %s22 = int_to_ptr.vmem [resolvable:$true] %s21
      %27 = dma.hbm_to_vmem [thread:$0]  %s20, 1024, %s22, [#allocation3], 128, 128, 8
    $region5: #{tpu_custom_call.1} parent=1 // pred_fallthru
      _
    // Predicated region
    $region6: #{tpu_custom_call.1} parent=1 // pred_check
      _
    $region7: #{tpu_custom_call.1} parent=1 // pred_check_branch
      %29 = sbr.rel (0) target = $region9
    $region8: #{tpu_custom_call.1} parent=1 // pred_region
      %31 = vsyncadd [#allocation6], 0
      %s32 = sshll.u32 %s1, 4
      %s33 = int_to_ptr.hbm [resolvable:$true] %s32
      %s34 = sshll.u32 [#allocation5], 4
      %s35 = int_to_ptr.vmem [resolvable:$true] %s34
      %40 = dma.hbm_to_vmem [thread:$0]  %s33, 1024, %s35, [#allocation6], 128, 128, 8
    $region9: #{tpu_custom_call.1} parent=1 // pred_fallthru
      _
    // Predicated region
    $region10: #{tpu_custom_call.1} parent=1 // pred_check
      _
    $region11: #{tpu_custom_call.1} parent=1 // pred_check_branch
      %42 = sbr.rel (0) target = $region13
    $region12: #{tpu_custom_call.1} parent=1 // pred_region
      %44 = vsyncadd [#allocation6], 0
      %s45 = sshll.u32 %s2, 4
      %s46 = int_to_ptr.hbm [resolvable:$true] %s45
      %s47 = sshll.u32 [#allocation7], 4
      %s48 = int_to_ptr.vmem [resolvable:$true] %s47
      %53 = dma.hbm_to_vmem [thread:$0]  %s46, 1024, %s48, [#allocation6], 128, 128, 8
    $region13: #{tpu_custom_call.1} parent=1 // pred_fallthru
      _
    // Predicated region
    $region14: #{tpu_custom_call.1} parent=1 // pred_check
      _
    $region15: #{tpu_custom_call.1} parent=1 // pred_check_branch
      %55 = sbr.rel (0) target = $region17
    $region16: #{tpu_custom_call.1} parent=1 // pred_region
      %57 = dma.done [#allocation3], 1024
    $region17: #{tpu_custom_call.1} parent=1 // pred_fallthru
      _
    // Predicated region
    $region18: #{tpu_custom_call.1} parent=1 // pred_check
      _
    $region19: #{tpu_custom_call.1} parent=1 // pred_check_branch
      %59 = sbr.rel (0) target = $region21
    $region20: #{tpu_custom_call.1} parent=1 // pred_region
      %61 = dma.done [#allocation6], 1024
    $region21: #{tpu_custom_call.1} parent=1 // pred_fallthru
      _
    // Predicated region
    $region22: #{tpu_custom_call.1} parent=1 // pred_check
      _
    $region23: #{tpu_custom_call.1} parent=1 // pred_check_branch
      %63 = sbr.rel (0) target = $region25
    $region24: #{tpu_custom_call.1} parent=1 // pred_region
      %65 = dma.done [#allocation6], 1024
    $region25: #{tpu_custom_call.1} parent=1 // pred_fallthru
      _
    %v66 = vld [vmem:[#allocation2] sm:$0xff]
    %v67 = vld [vmem:[#allocation2 + $0x8] sm:$0xff]
    %v68 = vld [vmem:[#allocation2 + $0x10] sm:$0xff]
    %v69 = vld [vmem:[#allocation2 + $0x18] sm:$0xff]
    %v70 = vld [vmem:[#allocation2 + $0x20] sm:$0xff]
    %v71 = vld [vmem:[#allocation2 + $0x28] sm:$0xff]
    %v72 = vld [vmem:[#allocation2 + $0x30] sm:$0xff]
    %v73 = vld [vmem:[#allocation2 + $0x38] sm:$0xff]
    %v74 = vld [vmem:[#allocation5] sm:$0xff]
    %v75 = vld [vmem:[#allocation5 + $0x8] sm:$0xff]
    %v76 = vld [vmem:[#allocation5 + $0x10] sm:$0xff]
    %v77 = vld [vmem:[#allocation5 + $0x18] sm:$0xff]
    %v78 = vld [vmem:[#allocation5 + $0x20] sm:$0xff]
    %v79 = vld [vmem:[#allocation5 + $0x28] sm:$0xff]
    %v80 = vld [vmem:[#allocation5 + $0x30] sm:$0xff]
    %v81 = vld [vmem:[#allocation5 + $0x38] sm:$0xff]
    %v82 = vld [vmem:[#allocation7] sm:$0xff]
    %v83 = vld [vmem:[#allocation7 + $0x8] sm:$0xff]
    %v84 = vld [vmem:[#allocation7 + $0x10] sm:$0xff]
    %v85 = vld [vmem:[#allocation7 + $0x18] sm:$0xff]
    %v86 = vld [vmem:[#allocation7 + $0x20] sm:$0xff]
    %v87 = vld [vmem:[#allocation7 + $0x28] sm:$0xff]
    %v88 = vld [vmem:[#allocation7 + $0x30] sm:$0xff]
    %v89 = vld [vmem:[#allocation7 + $0x38] sm:$0xff]
    %v90 = vmax.f32 %v74, 0.0
    %v91 = vmax.f32 %v75, 0.0
    %v92 = vmax.f32 %v76, 0.0
    %v93 = vmax.f32 %v77, 0.0
    %v94 = vmax.f32 %v78, 0.0
    %v95 = vmax.f32 %v79, 0.0
    %v96 = vmax.f32 %v80, 0.0
    %v97 = vmax.f32 %v81, 0.0
    %v98 = vand.u32 2147483647, %v74
    %v99 = vand.u32 2147483647, %v75
    %v100 = vand.u32 2147483647, %v76
    %v101 = vand.u32 2147483647, %v77
    %v102 = vand.u32 2147483647, %v78
    %v103 = vand.u32 2147483647, %v79
    %v104 = vand.u32 2147483647, %v80
    %v105 = vand.u32 2147483647, %v81
    %v106 = vsub.f32 0.0, %v98
    %v107 = vsub.f32 0.0, %v99
    %v108 = vsub.f32 0.0, %v100
    %v109 = vsub.f32 0.0, %v101
    %v110 = vsub.f32 0.0, %v102
    %v111 = vsub.f32 0.0, %v103
    %v112 = vsub.f32 0.0, %v104
    %v113 = vsub.f32 0.0, %v105
    %v114 = vmul.f32 %v106, 1.442695
    %v115 = vpow.pop %v114
    %v116 = vmul.f32 %v107, 1.442695
    %v117 = vpow.pop %v116
    %v118 = vmul.f32 %v108, 1.442695
    %v119 = vpow.pop %v118
    %v120 = vmul.f32 %v109, 1.442695
    %v121 = vpow.pop %v120
    %v122 = vmul.f32 %v110, 1.442695
    %v123 = vpow.pop %v122
    %v124 = vmul.f32 %v111, 1.442695
    %v125 = vpow.pop %v124
    %v126 = vmul.f32 %v112, 1.442695
    %v127 = vpow.pop %v126
    %v128 = vmul.f32 %v113, 1.442695
    %v129 = vpow.pop %v128
    %v130 = vadd.f32 %v115, 1.0
    %v131 = vadd.f32 %v117, 1.0
    %v132 = vadd.f32 %v119, 1.0
    %v133 = vadd.f32 %v121, 1.0
    %v134 = vadd.f32 %v123, 1.0
    %v135 = vadd.f32 %v125, 1.0
    %v136 = vadd.f32 %v127, 1.0
    %v137 = vadd.f32 %v129, 1.0
    %v138 = vlog2.pop %v130
    %v139 = vmul.f32 %v138, 0.6931472
    %v140 = vlog2.pop %v131
    %v141 = vmul.f32 %v140, 0.6931472
    %v142 = vlog2.pop %v132
    %v143 = vmul.f32 %v142, 0.6931472
    %v144 = vlog2.pop %v133
    %v145 = vmul.f32 %v144, 0.6931472
    %v146 = vlog2.pop %v134
    %v147 = vmul.f32 %v146, 0.6931472
    %v148 = vlog2.pop %v135
    %v149 = vmul.f32 %v148, 0.6931472
    %v150 = vlog2.pop %v136
    %v151 = vmul.f32 %v150, 0.6931472
    %v152 = vlog2.pop %v137
    %v153 = vmul.f32 %v152, 0.6931472
    %v154 = vadd.f32 %v90, %v139
    %v155 = vadd.f32 %v91, %v141
    %v156 = vadd.f32 %v92, %v143
    %v157 = vadd.f32 %v93, %v145
    %v158 = vadd.f32 %v94, %v147
    %v159 = vadd.f32 %v95, %v149
    %v160 = vadd.f32 %v96, %v151
    %v161 = vadd.f32 %v97, %v153
    %v162 = vmul.f32 %v154, %v82
    %v163 = vmul.f32 %v155, %v83
    %v164 = vmul.f32 %v156, %v84
    %v165 = vmul.f32 %v157, %v85
    %v166 = vmul.f32 %v158, %v86
    %v167 = vmul.f32 %v159, %v87
    %v168 = vmul.f32 %v160, %v88
    %v169 = vmul.f32 %v161, %v89
    %v170 = vadd.f32 %v66, %v162
    %v171 = vadd.f32 %v67, %v163
    %v172 = vadd.f32 %v68, %v164
    %v173 = vadd.f32 %v69, %v165
    %v174 = vadd.f32 %v70, %v166
    %v175 = vadd.f32 %v71, %v167
    %v176 = vadd.f32 %v72, %v168
    %v177 = vadd.f32 %v73, %v169
    %178 = vst [vmem:[#allocation8] sm:$0xff] %v170
    %179 = vst [vmem:[#allocation8 + $0x8] sm:$0xff] %v171
    %180 = vst [vmem:[#allocation8 + $0x10] sm:$0xff] %v172
    %181 = vst [vmem:[#allocation8 + $0x18] sm:$0xff] %v173
    %182 = vst [vmem:[#allocation8 + $0x20] sm:$0xff] %v174
    %183 = vst [vmem:[#allocation8 + $0x28] sm:$0xff] %v175
    %184 = vst [vmem:[#allocation8 + $0x30] sm:$0xff] %v176
    %185 = vst [vmem:[#allocation8 + $0x38] sm:$0xff] %v177
    %v186 = vmul.f32 %v170, %v170
    %v187 = vmul.f32 %v171, %v171
    %v188 = vmul.f32 %v172, %v172
    %v189 = vmul.f32 %v173, %v173
    %v190 = vmul.f32 %v174, %v174
    %v191 = vmul.f32 %v175, %v175
    %v192 = vmul.f32 %v176, %v176
    %v193 = vmul.f32 %v177, %v177
    %v194 = vmul.f32 %v186, 0.5
    %v195 = vmul.f32 %v187, 0.5
    %v196 = vmul.f32 %v188, 0.5
    %v197 = vmul.f32 %v189, 0.5
    %v198 = vmul.f32 %v190, 0.5
    %v199 = vmul.f32 %v191, 0.5
    %v200 = vmul.f32 %v192, 0.5
    %v201 = vmul.f32 %v193, 0.5
    %v202 = vsub.f32 -0.9189385, %v194
    %v203 = vsub.f32 -0.9189385, %v195
    %v204 = vsub.f32 -0.9189385, %v196
    %v205 = vsub.f32 -0.9189385, %v197
    %v206 = vsub.f32 -0.9189385, %v198
    %v207 = vsub.f32 -0.9189385, %v199
    %v208 = vsub.f32 -0.9189385, %v200
    %v209 = vsub.f32 -0.9189385, %v201
    %v210 = vlog2.pop %v154
    %v211 = vmul.f32 %v210, 0.6931472
    %v212 = vlog2.pop %v155
    %v213 = vmul.f32 %v212, 0.6931472
    %v214 = vlog2.pop %v156
    %v215 = vmul.f32 %v214, 0.6931472
    %v216 = vlog2.pop %v157
    %v217 = vmul.f32 %v216, 0.6931472
    %v218 = vlog2.pop %v158
    %v219 = vmul.f32 %v218, 0.6931472
    %v220 = vlog2.pop %v159
    %v221 = vmul.f32 %v220, 0.6931472
    %v222 = vlog2.pop %v160
    %v223 = vmul.f32 %v222, 0.6931472
    %v224 = vlog2.pop %v161
    %v225 = vmul.f32 %v224, 0.6931472
    %v226 = vsub.f32 -0.9189385, %v211
    %v227 = vsub.f32 -0.9189385, %v213
    %v228 = vsub.f32 -0.9189385, %v215
    %v229 = vsub.f32 -0.9189385, %v217
    %v230 = vsub.f32 -0.9189385, %v219
    %v231 = vsub.f32 -0.9189385, %v221
    %v232 = vsub.f32 -0.9189385, %v223
    %v233 = vsub.f32 -0.9189385, %v225
    %v234 = vmul.f32 %v82, %v82
    %v235 = vmul.f32 %v83, %v83
    %v236 = vmul.f32 %v84, %v84
    %v237 = vmul.f32 %v85, %v85
    %v238 = vmul.f32 %v86, %v86
    %v239 = vmul.f32 %v87, %v87
    %v240 = vmul.f32 %v88, %v88
    %v241 = vmul.f32 %v89, %v89
    %v242 = vmul.f32 %v234, 0.5
    %v243 = vmul.f32 %v235, 0.5
    %v244 = vmul.f32 %v236, 0.5
    %v245 = vmul.f32 %v237, 0.5
    %v246 = vmul.f32 %v238, 0.5
    %v247 = vmul.f32 %v239, 0.5
    %v248 = vmul.f32 %v240, 0.5
    %v249 = vmul.f32 %v241, 0.5
    %v250 = vsub.f32 %v226, %v242
    %v251 = vsub.f32 %v227, %v243
    %v252 = vsub.f32 %v228, %v244
    %v253 = vsub.f32 %v229, %v245
    %v254 = vsub.f32 %v230, %v246
    %v255 = vsub.f32 %v231, %v247
    %v256 = vsub.f32 %v232, %v248
    %v257 = vsub.f32 %v233, %v249
    %v258 = vadd.f32 %v202, %v203
    %v259 = vadd.f32 %v258, %v204
    %v260 = vadd.f32 %v259, %v205
    %v261 = vadd.f32 %v260, %v206
    %v262 = vadd.f32 %v261, %v207
    %v263 = vadd.f32 %v262, %v208
    %v264 = vadd.f32 %v263, %v209
    %v265 = vrot.slane %v264, 4
    %v266 = vadd.f32 %v264, %v265
    %v267 = vrot.slane %v266, 2
    %v268 = vadd.f32 %v266, %v267
    %v269 = vrot.slane %v268, 1
    %v270 = vadd.f32 %v268, %v269
    %271 = vst [vmem:[#allocation9] sm:$0x1] %v270
    %v272 = vadd.f32 %v250, %v251
    %v273 = vadd.f32 %v272, %v252
    %v274 = vadd.f32 %v273, %v253
    %v275 = vadd.f32 %v274, %v254
    %v276 = vadd.f32 %v275, %v255
    %v277 = vadd.f32 %v276, %v256
    %v278 = vadd.f32 %v277, %v257
    %v279 = vrot.slane %v278, 4
    %v280 = vadd.f32 %v278, %v279
    %v281 = vrot.slane %v280, 2
    %v282 = vadd.f32 %v280, %v281
    %v283 = vrot.slane %v282, 1
    %v284 = vadd.f32 %v282, %v283
    %285 = vst [vmem:[#allocation11] sm:$0x1] %v284
    // Predicated region
    $region26: #{tpu_custom_call.1} parent=1 // pred_check
      _
    $region27: #{tpu_custom_call.1} parent=1 // pred_check_branch
      %287 = sbr.rel (0) target = $region29
    $region28: #{tpu_custom_call.1} parent=1 // pred_region
      %289 = vsyncadd [#allocation4], 0
      %s290 = sshll.u32 [#allocation8], 4
      %s291 = int_to_ptr.vmem [resolvable:$true] %s290
      %s292 = sshll.u32 %s3, 4
      %s293 = int_to_ptr.hbm [resolvable:$true] %s292
      %298 = dma.vmem_to_hbm [thread:$0]  %s291, 1024, %s293, [#allocation4], 128, 128, 8
    $region29: #{tpu_custom_call.1} parent=1 // pred_fallthru
      _
    // Predicated region
    $region30: #{tpu_custom_call.1} parent=1 // pred_check
      _
    $region31: #{tpu_custom_call.1} parent=1 // pred_check_branch
      %300 = sbr.rel (0) target = $region33
    $region32: #{tpu_custom_call.1} parent=1 // pred_region
      %302 = vsyncadd [#allocation10], 0
      %s304 = sshll.u32 [#allocation9], 4
      %s305 = int_to_ptr.vmem [resolvable:$true] %s304
      %s306 = sshll.u32 %s4, 4
      %s307 = int_to_ptr.hbm [resolvable:$true] %s306
      %309 = dma.vmem_to_hbm [thread:$0]  %s305, 16, %s307, [#allocation10]
    $region33: #{tpu_custom_call.1} parent=1 // pred_fallthru
      _
    // Predicated region
    $region34: #{tpu_custom_call.1} parent=1 // pred_check
      _
    $region35: #{tpu_custom_call.1} parent=1 // pred_check_branch
      %311 = sbr.rel (0) target = $region37
    $region36: #{tpu_custom_call.1} parent=1 // pred_region
      %313 = vsyncadd [#allocation10], 0
      %s315 = sshll.u32 [#allocation11], 4
      %s316 = int_to_ptr.vmem [resolvable:$true] %s315
      %s317 = sshll.u32 %s5, 4
      %s318 = int_to_ptr.hbm [resolvable:$true] %s317
      %320 = dma.vmem_to_hbm [thread:$0]  %s316, 16, %s318, [#allocation10]
    $region37: #{tpu_custom_call.1} parent=1 // pred_fallthru
      _
    // Predicated region
    $region38: #{tpu_custom_call.1} parent=1 // pred_check
      _
    $region39: #{tpu_custom_call.1} parent=1 // pred_check_branch
      %322 = sbr.rel (0) target = $region41
    $region40: #{tpu_custom_call.1} parent=1 // pred_region
      %324 = dma.done [#allocation4], 1024
    $region41: #{tpu_custom_call.1} parent=1 // pred_fallthru
      _
    // Predicated region
    $region42: #{tpu_custom_call.1} parent=1 // pred_check
      _
    $region43: #{tpu_custom_call.1} parent=1 // pred_check_branch
      %326 = sbr.rel (0) target = $region45
    $region44: #{tpu_custom_call.1} parent=1 // pred_region
      %328 = dma.done [#allocation10], 16
    $region45: #{tpu_custom_call.1} parent=1 // pred_fallthru
      _
    // Predicated region
    $region46: #{tpu_custom_call.1} parent=1 // pred_check
      _
    $region47: #{tpu_custom_call.1} parent=1 // pred_check_branch
      %330 = sbr.rel (0) target = $region49
    $region48: #{tpu_custom_call.1} parent=1 // pred_region
      %332 = dma.done [#allocation10], 16
    $region49: #{tpu_custom_call.1} parent=1 // pred_fallthru
      _
    %333 = vsyncpa [#allocation3], 1
    %334 = vsyncpa [#allocation6], 1
    %335 = vsyncpa [#allocation4], 1
    %336 = vsyncpa [#allocation10], 1

</llo_original>
